<compile_context>
chip_gen: v6e
topology: v6e:2x2x1
jax: 0.10.0
libtpu: 0.0.40
codegen_flags: <defaults>
</compile_context>

<pallas_src>
import functools

import jax
import jax.numpy as jnp
from jax import lax
from jax.experimental import pallas as pl
from jax.experimental.pallas import tpu as pltpu

# MXU operand dtype (accumulation is always f32).  Set to jnp.float32 for
# bit-closer numerics at the cost of ~3x MXU throughput and 2x weight DMA.
MXU_DTYPE = jnp.bfloat16


def _mdot(a, b):
    """MXU matmul: operands in MXU_DTYPE, f32 accumulation."""
    return jnp.dot(a.astype(MXU_DTYPE), b.astype(MXU_DTYPE),
                   preferred_element_type=jnp.float32)


# ----------------------------------------------------------------------------
# Fused input projections (text / hand / arm) — one launch instead of three.
# ----------------------------------------------------------------------------
def _input_proj_kernel(t_ref, h_ref, a_ref, wt_ref, bt_ref, wh_ref, bh_ref,
                       wa_ref, ba_ref, to_ref, ho_ref, ao_ref):
    to_ref[...] = (_mdot(t_ref[...], wt_ref[...]) + bt_ref[...]).astype(to_ref.dtype)
    ho_ref[...] = (_mdot(h_ref[...], wh_ref[...]) + bh_ref[...]).astype(ho_ref.dtype)
    ao_ref[...] = (_mdot(a_ref[...], wa_ref[...]) + ba_ref[...]).astype(ao_ref.dtype)


def input_projections(emb2d, hand2d, arm2d, wt, bt, wh, bh, wa, ba):
    Mt, Td = emb2d.shape
    Mh, G = hand2d.shape
    Ma, _ = arm2d.shape
    D = wt.shape[1]

    def fb(shape):  # full-block spec
        return pl.BlockSpec(shape, lambda i, _n=len(shape): (0,) * _n)

    return pl.pallas_call(
        _input_proj_kernel,
        out_shape=(jax.ShapeDtypeStruct((Mt, D), jnp.float32),
                   jax.ShapeDtypeStruct((Mh, D), jnp.float32),
                   jax.ShapeDtypeStruct((Ma, D), jnp.float32)),
        grid=(1,),
        in_specs=[fb((Mt, Td)), fb((Mh, G)), fb((Ma, G)),
                  fb((Td, D)), fb((1, D)),
                  fb((G, D)), fb((1, D)),
                  fb((G, D)), fb((1, D))],
        out_specs=[fb((Mt, D)), fb((Mh, D)), fb((Ma, D))],
        compiler_params=pltpu.CompilerParams(
            dimension_semantics=("arbitrary",)),
    )(emb2d, hand2d, arm2d,
      wt, bt.reshape(1, D), wh, bh.reshape(1, D), wa, ba.reshape(1, D))


# ----------------------------------------------------------------------------
# Fused transformer stack + denoise projection.
#   grid = (batch_blocks, num_layers), activation carried in VMEM across L.
# ----------------------------------------------------------------------------
def _transformer_denoise_kernel(bias_ref, x_ref,
                                wqkv_ref, bqkv_ref, wo_ref, bo_ref,
                                ln1g_ref, ln1b_ref, wff1_ref, bff1_ref,
                                wff2_ref, bff2_ref, ln2g_ref, ln2b_ref,
                                wden_ref, bden_ref,
                                o_ref, act_ref, *, nhead, eps):
    l = pl.program_id(1)
    n_layers = pl.num_programs(1)

    # Load the input activation into the resident VMEM buffer at layer 0.
    @pl.when(l == 0)
    def _():
        act_ref[...] = x_ref[...].astype(jnp.float32)

    xb = act_ref[...]                                   # (Bb, S, D) f32
    Bb, S, D = xb.shape
    Dh = D // nhead
    scale = 1.0 / (Dh ** 0.5)

    xf = xb.reshape(Bb * S, D)                          # dense-M for MXU

    # ---- fused QKV projection: one wide matmul, one bias add -------------
    qkv = _mdot(xf, wqkv_ref[...]) + bqkv_ref[...]      # (Bb*S, 3D) f32

    # ---- multi-head self-attention (per row; (S,S) matmuls stay f32) -----
    rows = []
    for r in range(Bb):
        qkv_r = qkv[r * S:(r + 1) * S, :]               # (S, 3D)
        bias_r = bias_ref[r]                            # (1, S): 0 / -1e9
        heads = []
        for h in range(nhead):
            lo = h * Dh
            q_h = qkv_r[:, lo:lo + Dh]
            k_h = qkv_r[:, D + lo:D + lo + Dh]
            v_h = qkv_r[:, 2 * D + lo:2 * D + lo + Dh]
            s_h = lax.dot_general(q_h, k_h, (((1,), (1,)), ((), ())),
                                  preferred_element_type=jnp.float32)
            s_h = s_h * scale + bias_r
            m = jnp.max(s_h, axis=-1, keepdims=True)
            p = jnp.exp(s_h - m)
            denom = jnp.sum(p, axis=-1, keepdims=True)
            p = p * pl.reciprocal(denom, approx=True)
            heads.append(jnp.dot(p, v_h, preferred_element_type=jnp.float32))
        rows.append(jnp.concatenate(heads, axis=-1))    # (S, D)
    attn = jnp.concatenate(rows, axis=0)                # (Bb*S, D)

    # ---- single full-width output projection ------------------------------
    attn = _mdot(attn, wo_ref[...]) + bo_ref[...]

    def layer_norm(v, g_ref, b_ref):
        mu = jnp.mean(v, axis=-1, keepdims=True)
        vc = v - mu
        var = jnp.mean(vc * vc, axis=-1, keepdims=True)
        return vc * lax.rsqrt(var + eps) * g_ref[...] + b_ref[...]

    x1 = layer_norm(xf + attn, ln1g_ref, ln1b_ref)      # (Bb*S, D)

    # ---- feed-forward ------------------------------------------------------
    h1 = jnp.maximum(_mdot(x1, wff1_ref[...]) + bff1_ref[...], 0.0)
    y2 = _mdot(h1, wff2_ref[...]) + bff2_ref[...]
    x2 = layer_norm(x1 + y2, ln2g_ref, ln2b_ref)        # (Bb*S, D)

    act_ref[...] = x2.reshape(Bb, S, D)

    # ---- final layer: denoise projection (weight chosen per batch block) --
    @pl.when(l == n_layers - 1)
    def _():
        y = _mdot(x2, wden_ref[...]) + bden_ref[...]    # (Bb*S, G)
        o_ref[...] = y.reshape(Bb, S, -1).astype(o_ref.dtype)


def fused_transformer_denoise(x, key_bias, stacked, w_den, b_den, nhead, bblk):
    """x: (NB, S, D) hand+arm streams stacked on batch (hands first).
    key_bias: (NB, 1, S) additive attention bias.
    stacked: per-layer transformer weights stacked on a leading L axis.
    w_den/b_den: (2, D, G)/(2, 1, G) denoise weights, row 0 hands, row 1 arms.
    """
    NB, S, D = x.shape
    L = stacked["w_qkv"].shape[0]
    F = stacked["w_ff1"].shape[2]
    G = w_den.shape[-1]
    assert NB == 2 * bblk, "batch blocks must map 1:1 onto {hand, arm} streams"

    def act_spec(feat):
        return pl.BlockSpec((bblk, S, feat), lambda nb, l: (nb, 0, 0))

    def w_spec(r, c):
        return pl.BlockSpec((None, r, c), lambda nb, l: (l, 0, 0))

    def den_spec(r, c):
        return pl.BlockSpec((None, r, c), lambda nb, l: (nb, 0, 0))

    kernel = functools.partial(_transformer_denoise_kernel,
                               nhead=nhead, eps=1e-5)
    return pl.pallas_call(
        kernel,
        out_shape=jax.ShapeDtypeStruct((NB, S, G), jnp.float32),
        grid=(NB // bblk, L),
        in_specs=[
            pl.BlockSpec((bblk, 1, S), lambda nb, l: (nb, 0, 0)),   # key bias
            act_spec(D),                                            # input act
            w_spec(D, 3 * D), w_spec(1, 3 * D),                     # qkv
            w_spec(D, D), w_spec(1, D),                             # out proj
            w_spec(1, D), w_spec(1, D),                             # ln1
            w_spec(D, F), w_spec(1, F),                             # ff1
            w_spec(F, D), w_spec(1, D),                             # ff2
            w_spec(1, D), w_spec(1, D),                             # ln2
            den_spec(D, G), den_spec(1, G),                         # denoise
        ],
        out_specs=act_spec(G),
        scratch_shapes=[pltpu.VMEM((bblk, S, D), jnp.float32)],
        compiler_params=pltpu.CompilerParams(
            dimension_semantics=("parallel", "arbitrary"),
            vmem_limit_bytes=64 * 1024 * 1024),
    )(key_bias, x,
      stacked["w_qkv"], stacked["b_qkv"], stacked["w_o"], stacked["b_o"],
      stacked["ln1_g"], stacked["ln1_b"], stacked["w_ff1"], stacked["b_ff1"],
      stacked["w_ff2"], stacked["b_ff2"], stacked["ln2_g"], stacked["ln2_b"],
      w_den, b_den)


# ----------------------------------------------------------------------------
# DiffusionModel forward
# ----------------------------------------------------------------------------
def _round_up(n, m):
    return ((n + m - 1) // m) * m


def _fit_seq(x, target):
    B, S, G = x.shape
    if S > target:
        return x[:, :target, :]
    if S < target:
        return jnp.concatenate(
            [x, jnp.zeros((B, target - S, G), x.dtype)], axis=1)
    return x


def diffusion_model_forward(params, text_ids, text_attention_mask,
                            corrupted_hand_gestures, corrupted_arm_gestures,
                            time_embedding):
    # TODO(synk): BertModel.from_pretrained('bert-base-uncased') (pretrained
    # checkpoint) has no clean Pallas equivalent; replaced by a deterministic
    # embedding-table encoder producing `last_hidden_state` (B, St, text_dim).
    emb = params["text_emb"][text_ids]                        # (B, St, text_dim)
    emb = emb * text_attention_mask[..., None].astype(emb.dtype)

    B, St, Td = emb.shape
    D = params["hidden_dim"]
    G = corrupted_hand_gestures.shape[-1]
    _, Sh, _ = corrupted_hand_gestures.shape
    _, Sa, _ = corrupted_arm_gestures.shape

    te2d, hp2d, ap2d = input_projections(
        emb.reshape(B * St, Td),
        corrupted_hand_gestures.reshape(B * Sh, G),
        corrupted_arm_gestures.reshape(B * Sa, G),
        params["w_text"], params["b_text"],
        params["w_ih"], params["b_ih"],
        params["w_ia"], params["b_ia"])
    text_embeds = te2d.reshape(B, St, D)
    hand_p = hp2d.reshape(B, Sh, D)
    arm_p = ap2d.reshape(B, Sa, D)

    max_seq = max(Sh, Sa)
    te = text_embeds[:, :max_seq, :]
    tm = time_embedding[:, :max_seq, :].astype(text_embeds.dtype)

    comb_h = jnp.concatenate([te, hand_p, tm], axis=1)        # (B, Sc_h, D)
    comb_a = jnp.concatenate([te, arm_p, tm], axis=1)         # (B, Sc_a, D)
    Sc_h, Sc_a = comb_h.shape[1], comb_a.shape[1]

    # Both streams share the transformer weights -> pad to a common sequence
    # length, stack on the batch axis, mask padded keys in attention.
    S_pad = _round_up(max(Sc_h, Sc_a), 8)

    def pad_seq(xx):
        pad = S_pad - xx.shape[1]
        if pad:
            xx = jnp.concatenate(
                [xx, jnp.zeros((B, pad, D), xx.dtype)], axis=1)
        return xx

    x = jnp.concatenate([pad_seq(comb_h), pad_seq(comb_a)], axis=0)  # (2B,S,D)

    key_idx = jnp.arange(S_pad)
    bias_h = jnp.where(key_idx < Sc_h, 0.0, -1e9).astype(jnp.float32)
    bias_a = jnp.where(key_idx < Sc_a, 0.0, -1e9).astype(jnp.float32)
    key_bias = jnp.concatenate(
        [jnp.broadcast_to(bias_h, (B, 1, S_pad)),
         jnp.broadcast_to(bias_a, (B, 1, S_pad))], axis=0)            # (2B,1,S)

    den = fused_transformer_denoise(
        x, key_bias, params["stacked_layers"],
        params["w_den"], params["b_den"], params["nhead"], bblk=B)    # (2B,S,G)

    den_h = _fit_seq(den[:B, :Sc_h, :], Sh)
    den_a = _fit_seq(den[B:, :Sc_a, :], Sa)
    return den_h, den_a


# ----------------------------------------------------------------------------
# Deterministic parameter initialisation (shapes follow the module __init__)
# ----------------------------------------------------------------------------
def init_params(key, text_dim, hidden_dim, gesture_dim, num_layers,
                vocab=100, nhead=8, ffn_dim=2048):
    assert hidden_dim % nhead == 0
    keys = jax.random.split(key, 8 + num_layers)

    def w(k, shape):
        return jax.random.normal(k, shape, jnp.float32) * 0.02

    p = {"hidden_dim": hidden_dim, "nhead": nhead}
    p["text_emb"] = w(keys[0], (vocab, text_dim))
    p["w_text"] = w(keys[1], (text_dim, hidden_dim)).astype(MXU_DTYPE)
    p["b_text"] = jnp.zeros((hidden_dim,), jnp.float32)
    p["w_ih"] = w(keys[2], (gesture_dim, hidden_dim)).astype(MXU_DTYPE)
    p["b_ih"] = jnp.zeros((hidden_dim,), jnp.float32)
    p["w_ia"] = w(keys[3], (gesture_dim, hidden_dim)).astype(MXU_DTYPE)
    p["b_ia"] = jnp.zeros((hidden_dim,), jnp.float32)

    # Denoise projectors, stacked: row 0 = hands, row 1 = arms.
    p["w_den"] = jnp.stack(
        [w(keys[4], (hidden_dim, gesture_dim)),
         w(keys[5], (hidden_dim, gesture_dim))], axis=0).astype(MXU_DTYPE)
    p["b_den"] = jnp.zeros((2, 1, gesture_dim), jnp.float32)

    wqkv, wo, wff1, wff2 = [], [], [], []
    for l in range(num_layers):
        lk = jax.random.split(keys[6 + l], 4)
        wqkv.append(w(lk[0], (hidden_dim, 3 * hidden_dim)))
        wo.append(w(lk[1], (hidden_dim, hidden_dim)))
        wff1.append(w(lk[2], (hidden_dim, ffn_dim)))
        wff2.append(w(lk[3], (ffn_dim, hidden_dim)))

    L, D, F = num_layers, hidden_dim, ffn_dim
    p["stacked_layers"] = dict(
        w_qkv=jnp.stack(wqkv).astype(MXU_DTYPE),      # (L, D, 3D)
        b_qkv=jnp.zeros((L, 1, 3 * D), jnp.float32),
        w_o=jnp.stack(wo).astype(MXU_DTYPE),          # (L, D, D)
        b_o=jnp.zeros((L, 1, D), jnp.float32),
        ln1_g=jnp.ones((L, 1, D), jnp.float32),
        ln1_b=jnp.zeros((L, 1, D), jnp.float32),
        w_ff1=jnp.stack(wff1).astype(MXU_DTYPE),      # (L, D, F)
        b_ff1=jnp.zeros((L, 1, F), jnp.float32),
        w_ff2=jnp.stack(wff2).astype(MXU_DTYPE),      # (L, F, D)
        b_ff2=jnp.zeros((L, 1, D), jnp.float32),
        ln2_g=jnp.ones((L, 1, D), jnp.float32),
        ln2_b=jnp.zeros((L, 1, D), jnp.float32),
    )
    return p


# ----------------------------------------------------------------------------
if __name__ == "__main__":
    key = jax.random.PRNGKey(0)
    text_dim, hidden_dim, gesture_dim, num_layers = 32, 32, 16, 2
    B, seq_text, seq_hands, seq_arms = 2, 10, 6, 8

    k1, k2, k3, k4, kp = jax.random.split(key, 5)
    text_ids = jax.random.randint(k1, (B, seq_text), 0, 100)
    text_mask = jnp.ones((B, seq_text), jnp.float32)
    hand = jax.random.normal(k2, (B, seq_hands, gesture_dim), jnp.float32)
    arm = jax.random.normal(k3, (B, seq_arms, gesture_dim), jnp.float32)
    time_emb = jax.random.normal(k4, (B, max(seq_hands, seq_arms), hidden_dim),
                                 jnp.float32)

    params = init_params(kp, text_dim, hidden_dim, gesture_dim, num_layers)

    den_h, den_a = diffusion_model_forward(params, text_ids, text_mask,
                                           hand, arm, time_emb)
    jax.block_until_ready((den_h, den_a))
    assert den_h.shape == (B, seq_hands, gesture_dim)
    assert den_a.shape == (B, seq_arms, gesture_dim)
    assert bool(jnp.all(jnp.isfinite(den_h))) and bool(jnp.all(jnp.isfinite(den_a)))
    print("KERNEL_OK")
</pallas_src>

<mosaic_0001>
module attributes {stable_mosaic.version = 11 : i64} {
  func.func @_input_proj_kernel(%arg0: i32, %arg1: memref<20x32xf32, #tpu.memory_space<vmem>>, %arg2: memref<12x16xf32, #tpu.memory_space<vmem>>, %arg3: memref<16x16xf32, #tpu.memory_space<vmem>>, %arg4: memref<32x32xbf16, #tpu.memory_space<vmem>>, %arg5: memref<1x32xf32, #tpu.memory_space<vmem>>, %arg6: memref<16x32xbf16, #tpu.memory_space<vmem>>, %arg7: memref<1x32xf32, #tpu.memory_space<vmem>>, %arg8: memref<16x32xbf16, #tpu.memory_space<vmem>>, %arg9: memref<1x32xf32, #tpu.memory_space<vmem>>, %arg10: memref<20x32xf32, #tpu.memory_space<vmem>>, %arg11: memref<12x32xf32, #tpu.memory_space<vmem>>, %arg12: memref<16x32xf32, #tpu.memory_space<vmem>>) attributes {dimension_semantics = [#tpu.dimension_semantics<arbitrary>], iteration_bounds = array<i64: 1>, scalar_prefetch = 0 : i64, scratch_operands = 0 : i64, tpu.core_type = #tpu.core_type<tc>, window_params = [{pipeline_mode = #tpu.pipeline_mode<synchronous>, transform_indices = @transform_0, window_bounds = array<i64: 20, 32>}, {pipeline_mode = #tpu.pipeline_mode<synchronous>, transform_indices = @transform_1, window_bounds = array<i64: 12, 16>}, {pipeline_mode = #tpu.pipeline_mode<synchronous>, transform_indices = @transform_2, window_bounds = array<i64: 16, 16>}, {pipeline_mode = #tpu.pipeline_mode<synchronous>, transform_indices = @transform_3, window_bounds = array<i64: 32, 32>}, {pipeline_mode = #tpu.pipeline_mode<synchronous>, transform_indices = @transform_4, window_bounds = array<i64: 1, 32>}, {pipeline_mode = #tpu.pipeline_mode<synchronous>, transform_indices = @transform_5, window_bounds = array<i64: 16, 32>}, {pipeline_mode = #tpu.pipeline_mode<synchronous>, transform_indices = @transform_6, window_bounds = array<i64: 1, 32>}, {pipeline_mode = #tpu.pipeline_mode<synchronous>, transform_indices = @transform_7, window_bounds = array<i64: 16, 32>}, {pipeline_mode = #tpu.pipeline_mode<synchronous>, transform_indices = @transform_8, window_bounds = array<i64: 1, 32>}, {pipeline_mode = #tpu.pipeline_mode<synchronous>, transform_indices = @transform_9, window_bounds = array<i64: 20, 32>}, {pipeline_mode = #tpu.pipeline_mode<synchronous>, transform_indices = @transform_10, window_bounds = array<i64: 12, 32>}, {pipeline_mode = #tpu.pipeline_mode<synchronous>, transform_indices = @transform_11, window_bounds = array<i64: 16, 32>}]} {
    %c0 = arith.constant 0 : index
    %c0_0 = arith.constant 0 : index
    %0 = vector.load %arg1[%c0, %c0_0] : memref<20x32xf32, #tpu.memory_space<vmem>>, vector<20x32xf32>
    %c0_1 = arith.constant 0 : index
    %c0_2 = arith.constant 0 : index
    %1 = vector.load %arg4[%c0_1, %c0_2] : memref<32x32xbf16, #tpu.memory_space<vmem>>, vector<32x32xbf16>
    %2 = arith.truncf %0 : vector<20x32xf32> to vector<20x32xbf16>
    %cst = arith.constant dense<0.000000e+00> : vector<20x32xf32>
    %3 = tpu.matmul %2, %1, %cst {dimension_numbers = #tpu.dot_dimension_numbers<[1], [0], [0], [1], [0, 0, 1, 1], [], []>} : vector<20x32xbf16>, vector<32x32xbf16>, vector<20x32xf32> -> vector<20x32xf32>
    %c0_3 = arith.constant 0 : index
    %c0_4 = arith.constant 0 : index
    %4 = vector.load %arg5[%c0_3, %c0_4] : memref<1x32xf32, #tpu.memory_space<vmem>>, vector<1x32xf32>
    %5 = vector.broadcast %4 : vector<1x32xf32> to vector<20x32xf32>
    %6 = arith.addf %3, %5 : vector<20x32xf32>
    %c0_5 = arith.constant 0 : index
    %c0_6 = arith.constant 0 : index
    %7 = vector.load %arg10[%c0_5, %c0_6] : memref<20x32xf32, #tpu.memory_space<vmem>>, vector<20x32xf32>
    tpu.vector_store %arg10[%c0_5, %c0_6], %6 {strides = array<i32>} : memref<20x32xf32, #tpu.memory_space<vmem>>, vector<20x32xf32>,
    %c0_7 = arith.constant 0 : index
    %c0_8 = arith.constant 0 : index
    %8 = vector.load %arg2[%c0_7, %c0_8] : memref<12x16xf32, #tpu.memory_space<vmem>>, vector<12x16xf32>
    %c0_9 = arith.constant 0 : index
    %c0_10 = arith.constant 0 : index
    %9 = vector.load %arg6[%c0_9, %c0_10] : memref<16x32xbf16, #tpu.memory_space<vmem>>, vector<16x32xbf16>
    %10 = arith.truncf %8 : vector<12x16xf32> to vector<12x16xbf16>
    %cst_11 = arith.constant dense<0.000000e+00> : vector<12x32xf32>
    %11 = tpu.matmul %10, %9, %cst_11 {dimension_numbers = #tpu.dot_dimension_numbers<[1], [0], [0], [1], [0, 0, 1, 1], [], []>} : vector<12x16xbf16>, vector<16x32xbf16>, vector<12x32xf32> -> vector<12x32xf32>
    %c0_12 = arith.constant 0 : index
    %c0_13 = arith.constant 0 : index
    %12 = vector.load %arg7[%c0_12, %c0_13] : memref<1x32xf32, #tpu.memory_space<vmem>>, vector<1x32xf32>
    %13 = vector.broadcast %12 : vector<1x32xf32> to vector<12x32xf32>
    %14 = arith.addf %11, %13 : vector<12x32xf32>
    %c0_14 = arith.constant 0 : index
    %c0_15 = arith.constant 0 : index
    %15 = vector.load %arg11[%c0_14, %c0_15] : memref<12x32xf32, #tpu.memory_space<vmem>>, vector<12x32xf32>
    tpu.vector_store %arg11[%c0_14, %c0_15], %14 {strides = array<i32>} : memref<12x32xf32, #tpu.memory_space<vmem>>, vector<12x32xf32>,
    %c0_16 = arith.constant 0 : index
    %c0_17 = arith.constant 0 : index
    %16 = vector.load %arg3[%c0_16, %c0_17] : memref<16x16xf32, #tpu.memory_space<vmem>>, vector<16x16xf32>
    %c0_18 = arith.constant 0 : index
    %c0_19 = arith.constant 0 : index
    %17 = vector.load %arg8[%c0_18, %c0_19] : memref<16x32xbf16, #tpu.memory_space<vmem>>, vector<16x32xbf16>
    %18 = arith.truncf %16 : vector<16x16xf32> to vector<16x16xbf16>
    %cst_20 = arith.constant dense<0.000000e+00> : vector<16x32xf32>
    %19 = tpu.matmul %18, %17, %cst_20 {dimension_numbers = #tpu.dot_dimension_numbers<[1], [0], [0], [1], [0, 0, 1, 1], [], []>} : vector<16x16xbf16>, vector<16x32xbf16>, vector<16x32xf32> -> vector<16x32xf32>
    %c0_21 = arith.constant 0 : index
    %c0_22 = arith.constant 0 : index
    %20 = vector.load %arg9[%c0_21, %c0_22] : memref<1x32xf32, #tpu.memory_space<vmem>>, vector<1x32xf32>
    %21 = vector.broadcast %20 : vector<1x32xf32> to vector<16x32xf32>
    %22 = arith.addf %19, %21 : vector<16x32xf32>
    %c0_23 = arith.constant 0 : index
    %c0_24 = arith.constant 0 : index
    %23 = vector.load %arg12[%c0_23, %c0_24] : memref<16x32xf32, #tpu.memory_space<vmem>>, vector<16x32xf32>
    tpu.vector_store %arg12[%c0_23, %c0_24], %22 {strides = array<i32>} : memref<16x32xf32, #tpu.memory_space<vmem>>, vector<16x32xf32>,
    return
  }
  func.func @transform_0(%arg0: i32) -> (i32, i32) {
    %c0_i32 = arith.constant 0 : i32
    %c0_i32_0 = arith.constant 0 : i32
    %c0_i32_1 = arith.constant 0 : i32
    return %c0_i32, %c0_i32_0 : i32, i32
  }
  func.func @transform_1(%arg0: i32) -> (i32, i32) {
    %c0_i32 = arith.constant 0 : i32
    %c0_i32_0 = arith.constant 0 : i32
    %c0_i32_1 = arith.constant 0 : i32
    return %c0_i32, %c0_i32_0 : i32, i32
  }
  func.func @transform_2(%arg0: i32) -> (i32, i32) {
    %c0_i32 = arith.constant 0 : i32
    %c0_i32_0 = arith.constant 0 : i32
    %c0_i32_1 = arith.constant 0 : i32
    return %c0_i32, %c0_i32_0 : i32, i32
  }
  func.func @transform_3(%arg0: i32) -> (i32, i32) {
    %c0_i32 = arith.constant 0 : i32
    %c0_i32_0 = arith.constant 0 : i32
    %c0_i32_1 = arith.constant 0 : i32
    return %c0_i32, %c0_i32_0 : i32, i32
  }
  func.func @transform_4(%arg0: i32) -> (i32, i32) {
    %c0_i32 = arith.constant 0 : i32
    %c0_i32_0 = arith.constant 0 : i32
    %c0_i32_1 = arith.constant 0 : i32
    return %c0_i32, %c0_i32_0 : i32, i32
  }
  func.func @transform_5(%arg0: i32) -> (i32, i32) {
    %c0_i32 = arith.constant 0 : i32
    %c0_i32_0 = arith.constant 0 : i32
    %c0_i32_1 = arith.constant 0 : i32
    return %c0_i32, %c0_i32_0 : i32, i32
  }
  func.func @transform_6(%arg0: i32) -> (i32, i32) {
    %c0_i32 = arith.constant 0 : i32
    %c0_i32_0 = arith.constant 0 : i32
    %c0_i32_1 = arith.constant 0 : i32
    return %c0_i32, %c0_i32_0 : i32, i32
  }
  func.func @transform_7(%arg0: i32) -> (i32, i32) {
    %c0_i32 = arith.constant 0 : i32
    %c0_i32_0 = arith.constant 0 : i32
    %c0_i32_1 = arith.constant 0 : i32
    return %c0_i32, %c0_i32_0 : i32, i32
  }
  func.func @transform_8(%arg0: i32) -> (i32, i32) {
    %c0_i32 = arith.constant 0 : i32
    %c0_i32_0 = arith.constant 0 : i32
    %c0_i32_1 = arith.constant 0 : i32
    return %c0_i32, %c0_i32_0 : i32, i32
  }
  func.func @transform_9(%arg0: i32) -> (i32, i32) {
    %c0_i32 = arith.constant 0 : i32
    %c0_i32_0 = arith.constant 0 : i32
    %c0_i32_1 = arith.constant 0 : i32
    return %c0_i32, %c0_i32_0 : i32, i32
  }
  func.func @transform_10(%arg0: i32) -> (i32, i32) {
    %c0_i32 = arith.constant 0 : i32
    %c0_i32_0 = arith.constant 0 : i32
    %c0_i32_1 = arith.constant 0 : i32
    return %c0_i32, %c0_i32_0 : i32, i32
  }
  func.func @transform_11(%arg0: i32) -> (i32, i32) {
    %c0_i32 = arith.constant 0 : i32
    %c0_i32_0 = arith.constant 0 : i32
    %c0_i32_1 = arith.constant 0 : i32
    return %c0_i32, %c0_i32_0 : i32, i32
  }
}

</mosaic_0001>

<llo_original>
// kernel: tpu_custom_call.1
$region0: #{tpu_custom_call.1}
  #allocation0 [shape = 'u32[]', space=smem, size = 0x4, offset = 0x4, fixed_abs, tag = 'smem constant byte address 0x4 - core index']
  #allocation1 [shape = 'u32[144,128]{1,0:T(1,128)}', space=vmem, size = 0x12000, scoped, tag = 'internal scratch']
  %s0 = inlined_call_operand.hbm [shape: f32[20,32], index: 0, kind: input, shape index: {}]
  %s1 = inlined_call_operand.hbm [shape: f32[12,16], index: 1, kind: input, shape index: {}]
  %s2 = inlined_call_operand.hbm [shape: f32[16,16], index: 2, kind: input, shape index: {}]
  %s3 = inlined_call_operand.hbm [shape: bf16[32,32], index: 3, kind: input, shape index: {}]
  %s4 = inlined_call_operand.vmem [shape: f32[1,32], index: 4, kind: input, shape index: {}]
  %s5 = inlined_call_operand.vmem [shape: bf16[16,32], index: 5, kind: input, shape index: {}]
  %s6 = inlined_call_operand.vmem [shape: f32[1,32], index: 6, kind: input, shape index: {}]
  %s7 = inlined_call_operand.hbm [shape: bf16[16,32], index: 7, kind: input, shape index: {}]
  %s8 = inlined_call_operand.vmem [shape: f32[1,32], index: 8, kind: input, shape index: {}]
  %s9 = inlined_call_operand.hbm [shape: f32[20,32], index: 9, kind: output, shape index: {0}]
  %s10 = inlined_call_operand.hbm [shape: f32[12,32], index: 10, kind: output, shape index: {1}]
  %s11 = inlined_call_operand.hbm [shape: f32[16,32], index: 11, kind: output, shape index: {2}]
  %12 = xla_tuple %s9, %s10, %s11
  %s13 = sld [smem:[#allocation0]]
  $region82: #{tpu_custom_call.1} parent=0
    _
  %s15 = ssub.s32 1, %s13
  %s16 = scalar_select 0, %s15, %s13
  $region1: #{tpu_custom_call.1} parent=0
    #allocation2 [shape = 'u8[12288]{0}', space=vmem, size = 0x3000, scoped, tag = 'input window, operand 0, single buffered']
    #allocation3 [shape = 's32[1]{0}', space=sflag, size = 0x4, scoped, tag = 'scoped memory for tpu_custom_call.1']
    #allocation4 [shape = 's32[1]{0}', space=sflag, size = 0x4, scoped, tag = 'scoped memory for tpu_custom_call.1']
    #allocation5 [shape = 'u8[8192]{0}', space=vmem, size = 0x2000, scoped, tag = 'input window, operand 1, single buffered']
    #allocation6 [shape = 's32[1]{0}', space=sflag, size = 0x4, scoped, tag = 'scoped memory for tpu_custom_call.1']
    #allocation7 [shape = 'u8[8192]{0}', space=vmem, size = 0x2000, scoped, tag = 'input window, operand 2, single buffered']
    #allocation8 [shape = 'u8[8192]{0}', space=vmem, size = 0x2000, scoped, tag = 'input window, operand 3, single buffered']
    #allocation9 [shape = 's32[1]{0}', space=sflag, size = 0x4, scoped, tag = 'scoped memory for tpu_custom_call.1']
    #allocation10 [shape = 'u8[4096]{0}', space=vmem, size = 0x1000, scoped, tag = 'input window, operand 7, single buffered']
    #allocation11 [shape = 'u8[12288]{0}', space=vmem, size = 0x3000, scoped, tag = 'output window, operand 0, single buffered']
    #allocation12 [shape = 'u8[8192]{0}', space=vmem, size = 0x2000, scoped, tag = 'output window, operand 1, single buffered']
    #allocation13 [shape = 's32[1]{0}', space=sflag, size = 0x4, scoped, tag = 'scoped memory for tpu_custom_call.1']
    #allocation14 [shape = 'u8[8192]{0}', space=vmem, size = 0x2000, scoped, tag = 'output window, operand 2, single buffered']
    %17 = vsyncpa [#allocation3], 0
    %18 = vsyncpa [#allocation6], 0
    %19 = vsyncpa [#allocation9], 0
    %20 = vsyncpa [#allocation4], 0
    %21 = vsyncpa [#allocation13], 0
    // Predicated region
    $region2: #{tpu_custom_call.1} parent=1 // pred_check
      _
    $region3: #{tpu_custom_call.1} parent=1 // pred_check_branch
      %23 = sbr.rel (0) target = $region5
    $region4: #{tpu_custom_call.1} parent=1 // pred_region
      %s25 = ssub.s32 384, 384
      %26 = vsyncadd [#allocation3], %s25
      %s27 = sshll.u32 [#allocation2], 4
      %s28 = int_to_ptr.vmem [resolvable:$true] %s27
      %33 = dma.hbm_to_vmem [thread:$0]  %s0, 384, %s28, [#allocation3], 128, 128, 8
    $region5: #{tpu_custom_call.1} parent=1 // pred_fallthru
      _
    // Predicated region
    $region6: #{tpu_custom_call.1} parent=1 // pred_check
      _
    $region7: #{tpu_custom_call.1} parent=1 // pred_check_branch
      %35 = sbr.rel (0) target = $region9
    $region8: #{tpu_custom_call.1} parent=1 // pred_region
      %s37 = ssub.s32 256, 256
      %38 = vsyncadd [#allocation6], %s37
      %s39 = sshll.u32 [#allocation5], 4
      %s40 = int_to_ptr.vmem [resolvable:$true] %s39
      %45 = dma.hbm_to_vmem [thread:$0]  %s1, 256, %s40, [#allocation6], 128, 128, 8
    $region9: #{tpu_custom_call.1} parent=1 // pred_fallthru
      _
    // Predicated region
    $region10: #{tpu_custom_call.1} parent=1 // pred_check
      _
    $region11: #{tpu_custom_call.1} parent=1 // pred_check_branch
      %47 = sbr.rel (0) target = $region13
    $region12: #{tpu_custom_call.1} parent=1 // pred_region
      %s49 = ssub.s32 256, 256
      %50 = vsyncadd [#allocation6], %s49
      %s51 = sshll.u32 [#allocation7], 4
      %s52 = int_to_ptr.vmem [resolvable:$true] %s51
      %57 = dma.hbm_to_vmem [thread:$0]  %s2, 256, %s52, [#allocation6], 128, 128, 8
    $region13: #{tpu_custom_call.1} parent=1 // pred_fallthru
      _
    // Predicated region
    $region14: #{tpu_custom_call.1} parent=1 // pred_check
      _
    $region15: #{tpu_custom_call.1} parent=1 // pred_check_branch
      %59 = sbr.rel (0) target = $region17
    $region16: #{tpu_custom_call.1} parent=1 // pred_region
      %s61 = ssub.s32 256, 256
      %62 = vsyncadd [#allocation9], %s61
      %s63 = sshll.u32 [#allocation8], 4
      %s64 = int_to_ptr.vmem [resolvable:$true] %s63
      %69 = dma.hbm_to_vmem [thread:$0]  %s3, 256, %s64, [#allocation9], 64, 64, 4
    $region17: #{tpu_custom_call.1} parent=1 // pred_fallthru
      _
    // Predicated region
    $region18: #{tpu_custom_call.1} parent=1 // pred_check
      _
    $region19: #{tpu_custom_call.1} parent=1 // pred_check_branch
      %71 = sbr.rel (0) target = $region21
    $region20: #{tpu_custom_call.1} parent=1 // pred_region
      _
    $region21: #{tpu_custom_call.1} parent=1 // pred_fallthru
      _
    // Predicated region
    $region22: #{tpu_custom_call.1} parent=1 // pred_check
      _
    $region23: #{tpu_custom_call.1} parent=1 // pred_check_branch
      %73 = sbr.rel (0) target = $region25
    $region24: #{tpu_custom_call.1} parent=1 // pred_region
      _
    $region25: #{tpu_custom_call.1} parent=1 // pred_fallthru
      _
    // Predicated region
    $region26: #{tpu_custom_call.1} parent=1 // pred_check
      _
    $region27: #{tpu_custom_call.1} parent=1 // pred_check_branch
      %75 = sbr.rel (0) target = $region29
    $region28: #{tpu_custom_call.1} parent=1 // pred_region
      _
    $region29: #{tpu_custom_call.1} parent=1 // pred_fallthru
      _
    // Predicated region
    $region30: #{tpu_custom_call.1} parent=1 // pred_check
      _
    $region31: #{tpu_custom_call.1} parent=1 // pred_check_branch
      %77 = sbr.rel (0) target = $region33
    $region32: #{tpu_custom_call.1} parent=1 // pred_region
      %s79 = ssub.s32 128, 128
      %80 = vsyncadd [#allocation9], %s79
      %s81 = sshll.u32 [#allocation10], 4
      %s82 = int_to_ptr.vmem [resolvable:$true] %s81
      %87 = dma.hbm_to_vmem [thread:$0]  %s7, 128, %s82, [#allocation9], 64, 64, 4
    $region33: #{tpu_custom_call.1} parent=1 // pred_fallthru
      _
    // Predicated region
    $region34: #{tpu_custom_call.1} parent=1 // pred_check
      _
    $region35: #{tpu_custom_call.1} parent=1 // pred_check_branch
      %89 = sbr.rel (0) target = $region37
    $region36: #{tpu_custom_call.1} parent=1 // pred_region
      _
    $region37: #{tpu_custom_call.1} parent=1 // pred_fallthru
      _
    // Predicated region
    $region38: #{tpu_custom_call.1} parent=1 // pred_check
      _
    $region39: #{tpu_custom_call.1} parent=1 // pred_check_branch
      %91 = sbr.rel (0) target = $region41
    $region40: #{tpu_custom_call.1} parent=1 // pred_region
      %92 = dma.done [#allocation3], 384
    $region41: #{tpu_custom_call.1} parent=1 // pred_fallthru
      _
    // Predicated region
    $region42: #{tpu_custom_call.1} parent=1 // pred_check
      _
    $region43: #{tpu_custom_call.1} parent=1 // pred_check_branch
      %94 = sbr.rel (0) target = $region45
    $region44: #{tpu_custom_call.1} parent=1 // pred_region
      %95 = dma.done [#allocation6], 256
    $region45: #{tpu_custom_call.1} parent=1 // pred_fallthru
      _
    // Predicated region
    $region46: #{tpu_custom_call.1} parent=1 // pred_check
      _
    $region47: #{tpu_custom_call.1} parent=1 // pred_check_branch
      %97 = sbr.rel (0) target = $region49
    $region48: #{tpu_custom_call.1} parent=1 // pred_region
      %98 = dma.done [#allocation6], 256
    $region49: #{tpu_custom_call.1} parent=1 // pred_fallthru
      _
    // Predicated region
    $region50: #{tpu_custom_call.1} parent=1 // pred_check
      _
    $region51: #{tpu_custom_call.1} parent=1 // pred_check_branch
      %100 = sbr.rel (0) target = $region53
    $region52: #{tpu_custom_call.1} parent=1 // pred_region
      %101 = dma.done [#allocation9], 256
    $region53: #{tpu_custom_call.1} parent=1 // pred_fallthru
      _
    // Predicated region
    $region54: #{tpu_custom_call.1} parent=1 // pred_check
      _
    $region55: #{tpu_custom_call.1} parent=1 // pred_check_branch
      %103 = sbr.rel (0) target = $region57
    $region56: #{tpu_custom_call.1} parent=1 // pred_region
      %104 = dma.done [#allocation9], 128
    $region57: #{tpu_custom_call.1} parent=1 // pred_fallthru
      _
    %v106 = vld [vmem:[#allocation2] sm:$0xff]
    %v107 = vld [vmem:[#allocation2 + $0x8] sm:$0xff]
    %v108 = vld [vmem:[#allocation2 + $0x10] sm:$0xf]
    %v109 = vld [vmem:[#allocation8] sm:$0xf]
    %v110 = vld [vmem:[#allocation8 + $0x4] sm:$0xf]
    %v111 = vld [vmem:[#allocation8 + $0x8] sm:$0xf]
    %v112 = vld [vmem:[#allocation8 + $0xc] sm:$0xf]
    %v113 = vpack.c.bf16 %v107, %v106
    %v114 = vpack.c.bf16 %v108, %v108
    %v115 = vld [vmem:[%s4] sm:$0x1]
    %v117 = vlaneseq
    %v118 = vshrl.u32 %v117, 7
    %v119 = vsub.s32 0, %v118
    %v120 = vrot.slane %v115, %v119
    %v126 = vunpack.c.l.b16 %v109
    %v127 = vunpack.c.l.b16 %v110
    %v128 = vunpack.c.l.b16 %v111
    %v129 = vunpack.c.l.b16 %v112
    %v130 = vpack.c.b16 %v127, %v126
    %v131 = vpack.c.b16 %v129, %v128
    %vm134 = vcmask 261120
    %v136 = vsel %vm134, %v113, 0
    %v139 = vsel %vm134, %v114, 0
    %141 = vmatprep.subr.bf16.mxu0 0
    %142 = vmatpush1.bf16.msra.mxu0 0
    %143 = vmatprep.subr.bf16.mxu0 0
    %144 = vmatpush1.bf16.msra.mxu0 0
    %145 = vmatprep.subr.bf16.mxu0 0
    %146 = vmatpush1.bf16.msra.mxu0 0
    %147 = vmatprep.subr.bf16.mxu0 0
    %148 = vmatpush1.bf16.msra.mxu0 0
    %149 = vmatprep.subr.bf16.mxu0 0
    %150 = vmatpush1.bf16.msra.mxu0 0
    %151 = vmatprep.subr.bf16.mxu0 0
    %152 = vmatpush1.bf16.msra.mxu0 0
    %153 = vmatprep.subr.bf16.mxu0 0
    %154 = vmatpush1.bf16.msra.mxu0 %v131
    %155 = vmatprep.subr.bf16.mxu0 0
    %156 = vmatpush1.bf16.msra.mxu0 %v130
    %157 = vmatprep.subr.bf16.mxu0 0
    %158 = vmatpush2.bf16.msra.mxu0 0
    %159 = vmatprep.subr.bf16.mxu0 0
    %160 = vmatpush2.bf16.msra.mxu0 0
    %161 = vmatprep.subr.bf16.mxu0 0
    %162 = vmatpush2.bf16.msra.mxu0 0
    %163 = vmatprep.subr.bf16.mxu0 0
    %164 = vmatpush2.bf16.msra.mxu0 0
    %165 = vmatprep.subr.bf16.mxu0 0
    %166 = vmatpush2.bf16.msra.mxu0 0
    %167 = vmatprep.subr.bf16.mxu0 0
    %168 = vmatpush2.bf16.msra.mxu0 0
    %169 = vmatprep.subr.bf16.mxu0 0
    %170 = vmatpush2.bf16.msra.mxu0 0
    %171 = vmatprep.subr.bf16.mxu0 0
    %172 = vmatpush2.bf16.msra.mxu0 0
    %173 = vmatprep.mubr.bf16.mxu0 0
    %174 = vmatmul.mubr.bf16.gmra.mxu0 %v136
    %v175 = vpop.f32.mrf.mxu0
    %v176 = vadd.f32 %v120, %v175
    %v177 = vpop.f32.mrf.mxu0
    %v178 = vpop.f32.mrf.mxu0
    %v179 = vadd.f32 %v120, %v178
    %v180 = vpop.f32.mrf.mxu0
    %181 = vmatprep.mubr.bf16.mxu0 0
    %182 = vmatmul.mubr.bf16.gmra.mxu0 %v139
    %v183 = vpop.f32.mrf.mxu0
    %v184 = vadd.f32 %v120, %v183
    %v185 = vpop.f32.mrf.mxu0
    %v186 = vpop.f32.mrf.mxu0
    %v187 = vpop.f32.mrf.mxu0
    %188 = vdwg.mxu0
    %189 = vst.msk [vmem:[#allocation11] sm:$0xff] %vm134, %v176
    %190 = vst.msk [vmem:[#allocation11 + $0x8] sm:$0xff] %vm134, %v179
    %vm191 = vcmask 257024
    %192 = vst.msk [vmem:[#allocation11 + $0x10] sm:$0xf] %vm191, %v184
    %v193 = vld [vmem:[#allocation5] sm:$0xff]
    %v194 = vld [vmem:[#allocation5 + $0x8] sm:$0xf]
    %v195 = vld [vmem:[%s5] sm:$0xf]
    %v196 = vld [vmem:[%s5 + $0x4] sm:$0xf]
    %v197 = vpack.c.bf16 %v194, %v193
    %v198 = vld [vmem:[%s6] sm:$0x1]
    %v200 = vlaneseq
    %v201 = vshrl.u32 %v200, 7
    %v202 = vsub.s32 0, %v201
    %v203 = vrot.slane %v198, %v202
    %v207 = vunpack.c.l.b16 %v195
    %v208 = vunpack.c.l.b16 %v196
    %v209 = vpack.c.b16 %v208, %v207
    %vm211 = vcmask 130048
    %v213 = vsel %vm211, %v197, 0
    %215 = vmatprep.subr.bf16.mxu0 0
    %216 = vmatpush1.bf16.msra.mxu0 0
    %217 = vmatprep.subr.bf16.mxu0 0
    %218 = vmatpush1.bf16.msra.mxu0 0
    %219 = vmatprep.subr.bf16.mxu0 0
    %220 = vmatpush1.bf16.msra.mxu0 0
    %221 = vmatprep.subr.bf16.mxu0 0
    %222 = vmatpush1.bf16.msra.mxu0 0
    %223 = vmatprep.subr.bf16.mxu0 0
    %224 = vmatpush1.bf16.msra.mxu0 0
    %225 = vmatprep.subr.bf16.mxu0 0
    %226 = vmatpush1.bf16.msra.mxu0 0
    %227 = vmatprep.subr.bf16.mxu0 0
    %228 = vmatpush1.bf16.msra.mxu0 0
    %229 = vmatprep.subr.bf16.mxu0 0
    %230 = vmatpush1.bf16.msra.mxu0 %v209
    %231 = vmatprep.subr.bf16.mxu0 0
    %232 = vmatpush2.bf16.msra.mxu0 0
    %233 = vmatprep.subr.bf16.mxu0 0
    %234 = vmatpush2.bf16.msra.mxu0 0
    %235 = vmatprep.subr.bf16.mxu0 0
    %236 = vmatpush2.bf16.msra.mxu0 0
    %237 = vmatprep.subr.bf16.mxu0 0
    %238 = vmatpush2.bf16.msra.mxu0 0
    %239 = vmatprep.subr.bf16.mxu0 0
    %240 = vmatpush2.bf16.msra.mxu0 0
    %241 = vmatprep.subr.bf16.mxu0 0
    %242 = vmatpush2.bf16.msra.mxu0 0
    %243 = vmatprep.subr.bf16.mxu0 0
    %244 = vmatpush2.bf16.msra.mxu0 0
    %245 = vmatprep.subr.bf16.mxu0 0
    %246 = vmatpush2.bf16.msra.mxu0 0
    %247 = vmatprep.mubr.bf16.mxu0 0
    %248 = vmatmul.mubr.bf16.gmra.mxu0 %v213
    %v249 = vpop.f32.mrf.mxu0
    %v250 = vadd.f32 %v203, %v249
    %v251 = vpop.f32.mrf.mxu0
    %v252 = vpop.f32.mrf.mxu0
    %v253 = vadd.f32 %v203, %v252
    %v254 = vpop.f32.mrf.mxu0
    %255 = vdwg.mxu0
    %256 = vst.msk [vmem:[#allocation12] sm:$0xff] %vm134, %v250
    %257 = vst.msk [vmem:[#allocation12 + $0x8] sm:$0xf] %vm191, %v253
    %v258 = vld [vmem:[#allocation7] sm:$0xff]
    %v259 = vld [vmem:[#allocation7 + $0x8] sm:$0xff]
    %v260 = vld [vmem:[#allocation10] sm:$0xf]
    %v261 = vld [vmem:[#allocation10 + $0x4] sm:$0xf]
    %v262 = vpack.c.bf16 %v259, %v258
    %v263 = vld [vmem:[%s8] sm:$0x1]
    %v265 = vlaneseq
    %v266 = vshrl.u32 %v265, 7
    %v267 = vsub.s32 0, %v266
    %v268 = vrot.slane %v263, %v267
    %v272 = vunpack.c.l.b16 %v260
    %v273 = vunpack.c.l.b16 %v261
    %v274 = vpack.c.b16 %v273, %v272
    %v277 = vsel %vm211, %v262, 0
    %279 = vmatprep.subr.bf16.mxu0 0
    %280 = vmatpush1.bf16.msra.mxu0 0
    %281 = vmatprep.subr.bf16.mxu0 0
    %282 = vmatpush1.bf16.msra.mxu0 0
    %283 = vmatprep.subr.bf16.mxu0 0
    %284 = vmatpush1.bf16.msra.mxu0 0
    %285 = vmatprep.subr.bf16.mxu0 0
    %286 = vmatpush1.bf16.msra.mxu0 0
    %287 = vmatprep.subr.bf16.mxu0 0
    %288 = vmatpush1.bf16.msra.mxu0 0
    %289 = vmatprep.subr.bf16.mxu0 0
    %290 = vmatpush1.bf16.msra.mxu0 0
    %291 = vmatprep.subr.bf16.mxu0 0
    %292 = vmatpush1.bf16.msra.mxu0 0
    %293 = vmatprep.subr.bf16.mxu0 0
    %294 = vmatpush1.bf16.msra.mxu0 %v274
    %295 = vmatprep.subr.bf16.mxu0 0
    %296 = vmatpush2.bf16.msra.mxu0 0
    %297 = vmatprep.subr.bf16.mxu0 0
    %298 = vmatpush2.bf16.msra.mxu0 0
    %299 = vmatprep.subr.bf16.mxu0 0
    %300 = vmatpush2.bf16.msra.mxu0 0
    %301 = vmatprep.subr.bf16.mxu0 0
    %302 = vmatpush2.bf16.msra.mxu0 0
    %303 = vmatprep.subr.bf16.mxu0 0
    %304 = vmatpush2.bf16.msra.mxu0 0
    %305 = vmatprep.subr.bf16.mxu0 0
    %306 = vmatpush2.bf16.msra.mxu0 0
    %307 = vmatprep.subr.bf16.mxu0 0
    %308 = vmatpush2.bf16.msra.mxu0 0
    %309 = vmatprep.subr.bf16.mxu0 0
    %310 = vmatpush2.bf16.msra.mxu0 0
    %311 = vmatprep.mubr.bf16.mxu0 0
    %312 = vmatmul.mubr.bf16.gmra.mxu0 %v277
    %v313 = vpop.f32.mrf.mxu0
    %v314 = vadd.f32 %v268, %v313
    %v315 = vpop.f32.mrf.mxu0
    %v316 = vpop.f32.mrf.mxu0
    %v317 = vadd.f32 %v268, %v316
    %v318 = vpop.f32.mrf.mxu0
    %319 = vdwg.mxu0
    %320 = vst.msk [vmem:[#allocation14] sm:$0xff] %vm134, %v314
    %321 = vst.msk [vmem:[#allocation14 + $0x8] sm:$0xff] %vm134, %v317
    // Predicated region
    $region58: #{tpu_custom_call.1} parent=1 // pred_check
      _
    $region59: #{tpu_custom_call.1} parent=1 // pred_check_branch
      %323 = sbr.rel (0) target = $region61
    $region60: #{tpu_custom_call.1} parent=1 // pred_region
      %s325 = ssub.s32 384, 384
      %326 = vsyncadd [#allocation4], %s325
      %s327 = sshll.u32 [#allocation11], 4
      %s328 = int_to_ptr.vmem [resolvable:$true] %s327
      %333 = dma.vmem_to_hbm [thread:$0]  %s328, 384, %s9, [#allocation4], 128, 128, 8
    $region61: #{tpu_custom_call.1} parent=1 // pred_fallthru
      _
    // Predicated region
    $region62: #{tpu_custom_call.1} parent=1 // pred_check
      _
    $region63: #{tpu_custom_call.1} parent=1 // pred_check_branch
      %335 = sbr.rel (0) target = $region65
    $region64: #{tpu_custom_call.1} parent=1 // pred_region
      %s337 = ssub.s32 256, 256
      %338 = vsyncadd [#allocation13], %s337
      %s339 = sshll.u32 [#allocation12], 4
      %s340 = int_to_ptr.vmem [resolvable:$true] %s339
      %345 = dma.vmem_to_hbm [thread:$0]  %s340, 256, %s10, [#allocation13], 128, 128, 8
    $region65: #{tpu_custom_call.1} parent=1 // pred_fallthru
      _
    // Predicated region
    $region66: #{tpu_custom_call.1} parent=1 // pred_check
      _
    $region67: #{tpu_custom_call.1} parent=1 // pred_check_branch
      %347 = sbr.rel (0) target = $region69
    $region68: #{tpu_custom_call.1} parent=1 // pred_region
      %s349 = ssub.s32 256, 256
      %350 = vsyncadd [#allocation13], %s349
      %s351 = sshll.u32 [#allocation14], 4
      %s352 = int_to_ptr.vmem [resolvable:$true] %s351
      %357 = dma.vmem_to_hbm [thread:$0]  %s352, 256, %s11, [#allocation13], 128, 128, 8
    $region69: #{tpu_custom_call.1} parent=1 // pred_fallthru
      _
    // Predicated region
    $region70: #{tpu_custom_call.1} parent=1 // pred_check
      _
    $region71: #{tpu_custom_call.1} parent=1 // pred_check_branch
      %359 = sbr.rel (0) target = $region73
    $region72: #{tpu_custom_call.1} parent=1 // pred_region
      %360 = dma.done [#allocation4], 384
    $region73: #{tpu_custom_call.1} parent=1 // pred_fallthru
      _
    // Predicated region
    $region74: #{tpu_custom_call.1} parent=1 // pred_check
      _
    $region75: #{tpu_custom_call.1} parent=1 // pred_check_branch
      %362 = sbr.rel (0) target = $region77
    $region76: #{tpu_custom_call.1} parent=1 // pred_region
      %363 = dma.done [#allocation13], 256
    $region77: #{tpu_custom_call.1} parent=1 // pred_fallthru
      _
    // Predicated region
    $region78: #{tpu_custom_call.1} parent=1 // pred_check
      _
    $region79: #{tpu_custom_call.1} parent=1 // pred_check_branch
      %365 = sbr.rel (0) target = $region81
    $region80: #{tpu_custom_call.1} parent=1 // pred_region
      %366 = dma.done [#allocation13], 256
    $region81: #{tpu_custom_call.1} parent=1 // pred_fallthru
      _
    %367 = vsyncpa [#allocation3], 1
    %368 = vsyncpa [#allocation6], 1
    %369 = vsyncpa [#allocation9], 1
    %370 = vsyncpa [#allocation4], 1
    %371 = vsyncpa [#allocation13], 1

</llo_original>
